<compile_context>
chip_gen: v7x
topology: tpu7x:2x2x1
jax: 0.10.0
libtpu: 0.0.40
codegen_flags: <defaults>
</compile_context>

<pallas_src>
import jax
import jax.numpy as jnp
from jax import lax
from jax.experimental import pallas as pl
from jax.experimental.pallas import tpu as pltpu


# ---------------------------------------------------------------------------
# Kernels
# ---------------------------------------------------------------------------

def _gate_kernel_aligned(rep_ref, pv_ref, gv_ref, w_ref, ln_ref,
                         rp_ref, rg_ref, pm_ref, gm_ref):
    """Path for D % 128 == 0: fused (TB,D)x(D,2D) matmul, 4 separate outputs."""
    rep = rep_ref[...]
    x = rep + pv_ref[...] + gv_ref[...]                    # native dtype

    # MXU matmul in native dtype, f32 accumulate.
    z = jnp.dot(x, w_ref[...], preferred_element_type=jnp.float32)

    ln = ln_ref[...].astype(jnp.float32)                   # (3, 2D)
    bias, gamma, beta = ln[0:1, :], ln[1:2, :], ln[2:3, :]
    z = z + bias

    # Two-pass LayerNorm statistics over the 2D feature axis.
    mu = jnp.mean(z, axis=-1, keepdims=True)
    zc = z - mu
    var = jnp.mean(zc * zc, axis=-1, keepdims=True)
    inv_std = lax.rsqrt(var + 1e-5)
    h = jnp.maximum(zc * inv_std * gamma + beta, 0.0)

    D = rep.shape[-1]
    hp = h[:, :D]                                           # lane-aligned slices
    hg = h[:, D:]

    # softmax([hp, hg]) over the 2-way axis == sigmoid(hp - hg).
    pm = jax.nn.sigmoid(hp - hg)
    gm = 1.0 - pm

    rep_f32 = rep.astype(jnp.float32)
    rep_p = rep_f32 * pm
    rep_g = rep_f32 - rep_p                                 # rep * gm

    pm_ref[...] = pm
    gm_ref[...] = gm
    rp_ref[...] = rep_p.astype(rp_ref.dtype)
    rg_ref[...] = rep_g.astype(rg_ref.dtype)


def _gate_kernel_small(rep_ref, pv_ref, gv_ref, wp_ref, wg_ref, ln_ref, out_ref):
    """Path for small / unaligned D: split-W matmuls, one (TB, 4D) f32 slab."""
    rep = rep_ref[...]
    x = rep + pv_ref[...] + gv_ref[...]                     # native dtype

    zp = jnp.dot(x, wp_ref[...], preferred_element_type=jnp.float32)
    zg = jnp.dot(x, wg_ref[...], preferred_element_type=jnp.float32)

    # ln_ref rows: [b_p, b_g, gamma_p, gamma_g, beta_p, beta_g], each (1, D).
    ln = ln_ref[...].astype(jnp.float32)
    bp, bg = ln[0:1, :], ln[1:2, :]
    gp, gg = ln[2:3, :], ln[3:4, :]
    tp, tg = ln[4:5, :], ln[5:6, :]

    zp = zp + bp
    zg = zg + bg

    D = zp.shape[-1]
    inv_2d = 1.0 / (2.0 * D)

    # Two-pass LayerNorm statistics over the (virtual) 2D feature axis.
    mu = (jnp.sum(zp, axis=-1, keepdims=True)
          + jnp.sum(zg, axis=-1, keepdims=True)) * inv_2d
    zp_c = zp - mu
    zg_c = zg - mu
    var = (jnp.sum(zp_c * zp_c, axis=-1, keepdims=True)
           + jnp.sum(zg_c * zg_c, axis=-1, keepdims=True)) * inv_2d
    inv_std = lax.rsqrt(var + 1e-5)

    hp = jnp.maximum(zp_c * inv_std * gp + tp, 0.0)
    hg = jnp.maximum(zg_c * inv_std * gg + tg, 0.0)

    pm = jax.nn.sigmoid(hp - hg)
    gm = 1.0 - pm

    rep_f32 = rep.astype(jnp.float32)
    rep_p = rep_f32 * pm
    rep_g = rep_f32 - rep_p                                  # rep * gm

    # Lane-dense f32 slab: [rep_p | rep_g | pm | gm]  (4D lanes).
    out_ref[...] = jnp.concatenate([rep_p, rep_g, pm, gm], axis=-1)


# ---------------------------------------------------------------------------
# Wrapper
# ---------------------------------------------------------------------------

def _pick_batch_tile(B, D, in_itemsize):
    """~1 MiB of block bytes per grid step; >=2 steps when B allows (v7x)."""
    bytes_per_row = (3 * in_itemsize + 4 * 4) * D   # 3 inputs + 4 f32-ish outputs
    tb = (1 << 20) // max(bytes_per_row, 1)
    tb = max(tb, 8)
    tb = min(tb, 4096)
    if B >= 16:
        tb = min(tb, B // 2)      # guarantee >=2 grid steps for megacore sharding
    tb = min(tb, B)
    if tb < B:
        tb = max(8, (tb // 8) * 8)
    return tb


def _vmem_limit(in_bytes_per_step, out_bytes_per_step, weight_bytes):
    need = 2 * (in_bytes_per_step + out_bytes_per_step) + weight_bytes + (8 << 20)
    return int(min(max(need, 32 << 20), 128 << 20))


def gate_forward(rep, p_vec, g_vec, params, flag=0):
    """Fused Pallas implementation of Gate.forward (cs + elementwise gating)."""
    B, D = rep.shape
    W, b, gamma, beta = params
    in_itemsize = rep.dtype.itemsize
    w_itemsize = W.dtype.itemsize

    TB = _pick_batch_tile(B, D, in_itemsize)
    grid = (pl.cdiv(B, TB),)

    row_spec = pl.BlockSpec((TB, D), lambda i: (i, 0))

    if D % 128 == 0:
        # -------- lane-aligned path: fused weight, 4 separate outputs --------
        ln_params = jnp.concatenate([b, gamma, beta], axis=0)        # (3, 2D)
        w_spec = pl.BlockSpec((D, 2 * D), lambda i: (0, 0),
                              pipeline_mode=pl.Buffered(1))
        ln_spec = pl.BlockSpec((3, 2 * D), lambda i: (0, 0),
                               pipeline_mode=pl.Buffered(1))

        in_bytes = 3 * TB * D * in_itemsize
        out_bytes = 2 * TB * D * in_itemsize + 2 * TB * D * 4
        w_bytes = W.size * w_itemsize + ln_params.size * ln_params.dtype.itemsize

        rep_p, rep_g, pm, gm = pl.pallas_call(
            _gate_kernel_aligned,
            out_shape=(
                jax.ShapeDtypeStruct((B, D), rep.dtype),
                jax.ShapeDtypeStruct((B, D), rep.dtype),
                jax.ShapeDtypeStruct((B, D), jnp.float32),
                jax.ShapeDtypeStruct((B, D), jnp.float32),
            ),
            grid=grid,
            in_specs=[row_spec, row_spec, row_spec, w_spec, ln_spec],
            out_specs=(row_spec, row_spec, row_spec, row_spec),
            compiler_params=pltpu.CompilerParams(
                dimension_semantics=("parallel",),
                vmem_limit_bytes=_vmem_limit(in_bytes, out_bytes, w_bytes)),
        )(rep, p_vec, g_vec, W, ln_params)
    else:
        # -------- small / unaligned-D path: split weights, (B, 4D) f32 slab --
        Wp, Wg = W[:, :D], W[:, D:]
        ln_params = jnp.concatenate(
            [b[:, :D], b[:, D:], gamma[:, :D], gamma[:, D:],
             beta[:, :D], beta[:, D:]], axis=0)                      # (6, D)
        w_spec = pl.BlockSpec((D, D), lambda i: (0, 0),
                              pipeline_mode=pl.Buffered(1))
        ln_spec = pl.BlockSpec((6, D), lambda i: (0, 0),
                               pipeline_mode=pl.Buffered(1))

        in_bytes = 3 * TB * D * in_itemsize
        out_bytes = TB * 4 * D * 4
        w_bytes = 2 * D * D * w_itemsize + 6 * D * 4

        out = pl.pallas_call(
            _gate_kernel_small,
            out_shape=jax.ShapeDtypeStruct((B, 4 * D), jnp.float32),
            grid=grid,
            in_specs=[row_spec, row_spec, row_spec, w_spec, w_spec, ln_spec],
            out_specs=pl.BlockSpec((TB, 4 * D), lambda i: (i, 0)),
            compiler_params=pltpu.CompilerParams(
                dimension_semantics=("parallel",),
                vmem_limit_bytes=_vmem_limit(in_bytes, out_bytes, w_bytes)),
        )(rep, p_vec, g_vec, Wp, Wg, ln_params)

        rep_p = out[:, 0 * D:1 * D].astype(rep.dtype)
        rep_g = out[:, 1 * D:2 * D].astype(rep.dtype)
        pm = out[:, 2 * D:3 * D]
        gm = out[:, 3 * D:4 * D]

    # `pm`/`gm` correspond to the lists Gate appends to (self.pm / self.gm).
    if flag == 0:
        return (rep_p, rep_g), (pm, gm)
    elif flag == 1:
        return rep_p, (pm, gm)
    else:
        return rep_g, (pm, gm)


# ---------------------------------------------------------------------------
# Pure-JAX reference
# ---------------------------------------------------------------------------

def _reference(rep, p_vec, g_vec, params):
    W, b, gamma, beta = params
    x = (rep + p_vec + g_vec).astype(jnp.float32)
    z = x @ W.astype(jnp.float32) + b.astype(jnp.float32)
    mu = jnp.mean(z, axis=-1, keepdims=True)
    var = jnp.mean((z - mu) ** 2, axis=-1, keepdims=True)
    h = (z - mu) / jnp.sqrt(var + 1e-5) * gamma + beta
    h = jnp.maximum(h, 0.0)
    D = rep.shape[-1]
    h2 = h.reshape(rep.shape[0], 2, D)
    sm = jax.nn.softmax(h2, axis=1)
    pm, gm = sm[:, 0, :], sm[:, 1, :]
    r32 = rep.astype(jnp.float32)
    return r32 * pm, r32 * gm, pm, gm


def _make_case(key, B, D, dtype=jnp.float32):
    k1, k2, k3, k4, k5 = jax.random.split(key, 5)
    rep = jax.random.normal(k1, (B, D), dtype=dtype)
    p_vec = jax.random.normal(k2, (B, D), dtype=dtype)
    g_vec = jax.random.normal(k3, (B, D), dtype=dtype)
    W = jax.random.normal(k4, (D, 2 * D), dtype=dtype) * (1.0 / jnp.sqrt(D))
    b = jax.random.normal(k5, (1, 2 * D), dtype=dtype) * 0.01
    gamma = jnp.ones((1, 2 * D), dtype=dtype)
    beta = jnp.zeros((1, 2 * D), dtype=dtype)
    return rep, p_vec, g_vec, (W, b, gamma, beta)


def _check(rep, p_vec, g_vec, params):
    (rep_p, rep_g), (pm, gm) = gate_forward(rep, p_vec, g_vec, params, flag=0)
    jax.block_until_ready((rep_p, rep_g, pm, gm))
    ref_p, ref_g, ref_pm, ref_gm = _reference(rep, p_vec, g_vec, params)
    assert jnp.allclose(rep_p.astype(jnp.float32), ref_p, atol=1e-4, rtol=1e-4)
    assert jnp.allclose(rep_g.astype(jnp.float32), ref_g, atol=1e-4, rtol=1e-4)
    assert jnp.allclose(pm, ref_pm, atol=1e-4, rtol=1e-4)
    assert jnp.allclose(gm, ref_gm, atol=1e-4, rtol=1e-4)


if __name__ == "__main__":
    key = jax.random.PRNGKey(0)
    k_small, k_aligned = jax.random.split(key, 2)

    # Small / unaligned-D path (batch=8, hidden=32) -> (B, 4D) slab kernel.
    _check(*_make_case(k_small, B=8, D=32))

    # Lane-aligned path (batch=16, hidden=128) -> fused-W, 4-output kernel,
    # grid of 2 steps (exercises megacore sharding on v7x).
    _check(*_make_case(k_aligned, B=16, D=128))

    print("KERNEL_OK")
</pallas_src>

<mosaic_0001>
module attributes {stable_mosaic.version = 11 : i64} {
  func.func @_gate_kernel_small(%arg0: i32, %arg1: memref<8x32xf32, #tpu.memory_space<vmem>>, %arg2: memref<8x32xf32, #tpu.memory_space<vmem>>, %arg3: memref<8x32xf32, #tpu.memory_space<vmem>>, %arg4: memref<32x32xf32, #tpu.memory_space<vmem>>, %arg5: memref<32x32xf32, #tpu.memory_space<vmem>>, %arg6: memref<6x32xf32, #tpu.memory_space<vmem>>, %arg7: memref<8x128xf32, #tpu.memory_space<vmem>>) attributes {dimension_semantics = [#tpu.dimension_semantics<parallel>], iteration_bounds = array<i64: 1>, scalar_prefetch = 0 : i64, scratch_operands = 0 : i64, tpu.core_type = #tpu.core_type<tc>, window_params = [{transform_indices = @transform_0, window_bounds = array<i64: 8, 32>}, {transform_indices = @transform_1, window_bounds = array<i64: 8, 32>}, {transform_indices = @transform_2, window_bounds = array<i64: 8, 32>}, {pipeline_mode = #tpu.pipeline_mode<synchronous>, transform_indices = @transform_3, window_bounds = array<i64: 32, 32>}, {pipeline_mode = #tpu.pipeline_mode<synchronous>, transform_indices = @transform_4, window_bounds = array<i64: 32, 32>}, {pipeline_mode = #tpu.pipeline_mode<synchronous>, transform_indices = @transform_5, window_bounds = array<i64: 6, 32>}, {transform_indices = @transform_6, window_bounds = array<i64: 8, 128>}]} {
    %c0 = arith.constant 0 : index
    %c0_0 = arith.constant 0 : index
    %0 = vector.load %arg1[%c0, %c0_0] : memref<8x32xf32, #tpu.memory_space<vmem>>, vector<8x32xf32>
    %c0_1 = arith.constant 0 : index
    %c0_2 = arith.constant 0 : index
    %1 = vector.load %arg2[%c0_1, %c0_2] : memref<8x32xf32, #tpu.memory_space<vmem>>, vector<8x32xf32>
    %2 = arith.addf %0, %1 : vector<8x32xf32>
    %c0_3 = arith.constant 0 : index
    %c0_4 = arith.constant 0 : index
    %3 = vector.load %arg3[%c0_3, %c0_4] : memref<8x32xf32, #tpu.memory_space<vmem>>, vector<8x32xf32>
    %4 = arith.addf %2, %3 : vector<8x32xf32>
    %c0_5 = arith.constant 0 : index
    %c0_6 = arith.constant 0 : index
    %5 = vector.load %arg4[%c0_5, %c0_6] : memref<32x32xf32, #tpu.memory_space<vmem>>, vector<32x32xf32>
    %cst = arith.constant dense<0.000000e+00> : vector<8x32xf32>
    %6 = tpu.matmul %4, %5, %cst {dimension_numbers = #tpu.dot_dimension_numbers<[1], [0], [0], [1], [0, 0, 1, 1], [], []>} : vector<8x32xf32>, vector<32x32xf32>, vector<8x32xf32> -> vector<8x32xf32>
    %c0_7 = arith.constant 0 : index
    %c0_8 = arith.constant 0 : index
    %7 = vector.load %arg5[%c0_7, %c0_8] : memref<32x32xf32, #tpu.memory_space<vmem>>, vector<32x32xf32>
    %cst_9 = arith.constant dense<0.000000e+00> : vector<8x32xf32>
    %8 = tpu.matmul %4, %7, %cst_9 {dimension_numbers = #tpu.dot_dimension_numbers<[1], [0], [0], [1], [0, 0, 1, 1], [], []>} : vector<8x32xf32>, vector<32x32xf32>, vector<8x32xf32> -> vector<8x32xf32>
    %c0_10 = arith.constant 0 : index
    %c0_11 = arith.constant 0 : index
    %9 = vector.load %arg6[%c0_10, %c0_11] : memref<6x32xf32, #tpu.memory_space<vmem>>, vector<6x32xf32>
    %10 = vector.extract_strided_slice %9 {offsets = [0, 0], sizes = [1, 32], strides = [1, 1]} : vector<6x32xf32> to vector<1x32xf32>
    %11 = vector.extract_strided_slice %9 {offsets = [1, 0], sizes = [1, 32], strides = [1, 1]} : vector<6x32xf32> to vector<1x32xf32>
    %12 = vector.extract_strided_slice %9 {offsets = [2, 0], sizes = [1, 32], strides = [1, 1]} : vector<6x32xf32> to vector<1x32xf32>
    %13 = vector.extract_strided_slice %9 {offsets = [3, 0], sizes = [1, 32], strides = [1, 1]} : vector<6x32xf32> to vector<1x32xf32>
    %14 = vector.extract_strided_slice %9 {offsets = [4, 0], sizes = [1, 32], strides = [1, 1]} : vector<6x32xf32> to vector<1x32xf32>
    %15 = vector.extract_strided_slice %9 {offsets = [5, 0], sizes = [1, 32], strides = [1, 1]} : vector<6x32xf32> to vector<1x32xf32>
    %16 = vector.broadcast %10 : vector<1x32xf32> to vector<8x32xf32>
    %17 = arith.addf %6, %16 : vector<8x32xf32>
    %18 = vector.broadcast %11 : vector<1x32xf32> to vector<8x32xf32>
    %19 = arith.addf %8, %18 : vector<8x32xf32>
    %cst_12 = arith.constant dense<0.000000e+00> : vector<8xf32>
    %20 = vector.multi_reduction <add>, %17, %cst_12 [1] : vector<8x32xf32> to vector<8xf32>
    %21 = vector.shape_cast %20 : vector<8xf32> to vector<8x1xf32>
    %cst_13 = arith.constant dense<0.000000e+00> : vector<8xf32>
    %22 = vector.multi_reduction <add>, %19, %cst_13 [1] : vector<8x32xf32> to vector<8xf32>
    %23 = vector.shape_cast %22 : vector<8xf32> to vector<8x1xf32>
    %24 = arith.addf %21, %23 : vector<8x1xf32>
    %cst_14 = arith.constant 1.562500e-02 : f32
    %25 = vector.broadcast %cst_14 : f32 to vector<8x1xf32>
    %26 = arith.mulf %24, %25 : vector<8x1xf32>
    %27 = vector.broadcast %26 : vector<8x1xf32> to vector<8x32xf32>
    %28 = arith.subf %17, %27 : vector<8x32xf32>
    %29 = vector.broadcast %26 : vector<8x1xf32> to vector<8x32xf32>
    %30 = arith.subf %19, %29 : vector<8x32xf32>
    %31 = arith.mulf %28, %28 : vector<8x32xf32>
    %cst_15 = arith.constant dense<0.000000e+00> : vector<8xf32>
    %32 = vector.multi_reduction <add>, %31, %cst_15 [1] : vector<8x32xf32> to vector<8xf32>
    %33 = vector.shape_cast %32 : vector<8xf32> to vector<8x1xf32>
    %34 = arith.mulf %30, %30 : vector<8x32xf32>
    %cst_16 = arith.constant dense<0.000000e+00> : vector<8xf32>
    %35 = vector.multi_reduction <add>, %34, %cst_16 [1] : vector<8x32xf32> to vector<8xf32>
    %36 = vector.shape_cast %35 : vector<8xf32> to vector<8x1xf32>
    %37 = arith.addf %33, %36 : vector<8x1xf32>
    %cst_17 = arith.constant 1.562500e-02 : f32
    %38 = vector.broadcast %cst_17 : f32 to vector<8x1xf32>
    %39 = arith.mulf %37, %38 : vector<8x1xf32>
    %cst_18 = arith.constant 9.99999974E-6 : f32
    %40 = vector.broadcast %cst_18 : f32 to vector<8x1xf32>
    %41 = arith.addf %39, %40 : vector<8x1xf32>
    %42 = math.rsqrt %41 : vector<8x1xf32>
    %43 = vector.broadcast %42 : vector<8x1xf32> to vector<8x32xf32>
    %44 = arith.mulf %28, %43 : vector<8x32xf32>
    %45 = vector.broadcast %12 : vector<1x32xf32> to vector<8x32xf32>
    %46 = arith.mulf %44, %45 : vector<8x32xf32>
    %47 = vector.broadcast %14 : vector<1x32xf32> to vector<8x32xf32>
    %48 = arith.addf %46, %47 : vector<8x32xf32>
    %cst_19 = arith.constant 0.000000e+00 : f32
    %49 = vector.broadcast %cst_19 : f32 to vector<8x32xf32>
    %50 = arith.maximumf %48, %49 : vector<8x32xf32>
    %51 = vector.broadcast %42 : vector<8x1xf32> to vector<8x32xf32>
    %52 = arith.mulf %30, %51 : vector<8x32xf32>
    %53 = vector.broadcast %13 : vector<1x32xf32> to vector<8x32xf32>
    %54 = arith.mulf %52, %53 : vector<8x32xf32>
    %55 = vector.broadcast %15 : vector<1x32xf32> to vector<8x32xf32>
    %56 = arith.addf %54, %55 : vector<8x32xf32>
    %cst_20 = arith.constant 0.000000e+00 : f32
    %57 = vector.broadcast %cst_20 : f32 to vector<8x32xf32>
    %58 = arith.maximumf %56, %57 : vector<8x32xf32>
    %59 = arith.subf %50, %58 : vector<8x32xf32>
    %60 = arith.negf %59 : vector<8x32xf32>
    %61 = math.exp %60 : vector<8x32xf32>
    %cst_21 = arith.constant 1.000000e+00 : f32
    %62 = vector.broadcast %cst_21 : f32 to vector<8x32xf32>
    %63 = arith.addf %62, %61 : vector<8x32xf32>
    %64 = arith.divf %62, %63 : vector<8x32xf32>
    %cst_22 = arith.constant 1.000000e+00 : f32
    %65 = vector.broadcast %cst_22 : f32 to vector<8x32xf32>
    %66 = arith.subf %65, %64 : vector<8x32xf32>
    %67 = arith.mulf %0, %64 : vector<8x32xf32>
    %68 = arith.subf %0, %67 : vector<8x32xf32>
    %69 = tpu.concatenate %67, %68, %64, %66 in 1 : vector<8x32xf32>, vector<8x32xf32>, vector<8x32xf32>, vector<8x32xf32> -> vector<8x128xf32>
    %c0_23 = arith.constant 0 : index
    %c0_24 = arith.constant 0 : index
    %70 = vector.load %arg7[%c0_23, %c0_24] : memref<8x128xf32, #tpu.memory_space<vmem>>, vector<8x128xf32>
    tpu.vector_store %arg7[%c0_23, %c0_24], %69 {strides = array<i32>} : memref<8x128xf32, #tpu.memory_space<vmem>>, vector<8x128xf32>,
    return
  }
  func.func @transform_0(%arg0: i32) -> (i32, i32) {
    %c0_i32 = arith.constant 0 : i32
    %c0_i32_0 = arith.constant 0 : i32
    return %arg0, %c0_i32 : i32, i32
  }
  func.func @transform_1(%arg0: i32) -> (i32, i32) {
    %c0_i32 = arith.constant 0 : i32
    %c0_i32_0 = arith.constant 0 : i32
    return %arg0, %c0_i32 : i32, i32
  }
  func.func @transform_2(%arg0: i32) -> (i32, i32) {
    %c0_i32 = arith.constant 0 : i32
    %c0_i32_0 = arith.constant 0 : i32
    return %arg0, %c0_i32 : i32, i32
  }
  func.func @transform_3(%arg0: i32) -> (i32, i32) {
    %c0_i32 = arith.constant 0 : i32
    %c0_i32_0 = arith.constant 0 : i32
    %c0_i32_1 = arith.constant 0 : i32
    return %c0_i32, %c0_i32_0 : i32, i32
  }
  func.func @transform_4(%arg0: i32) -> (i32, i32) {
    %c0_i32 = arith.constant 0 : i32
    %c0_i32_0 = arith.constant 0 : i32
    %c0_i32_1 = arith.constant 0 : i32
    return %c0_i32, %c0_i32_0 : i32, i32
  }
  func.func @transform_5(%arg0: i32) -> (i32, i32) {
    %c0_i32 = arith.constant 0 : i32
    %c0_i32_0 = arith.constant 0 : i32
    %c0_i32_1 = arith.constant 0 : i32
    return %c0_i32, %c0_i32_0 : i32, i32
  }
  func.func @transform_6(%arg0: i32) -> (i32, i32) {
    %c0_i32 = arith.constant 0 : i32
    %c0_i32_0 = arith.constant 0 : i32
    return %arg0, %c0_i32 : i32, i32
  }
}

</mosaic_0001>

<llo_original>
// kernel: tpu_custom_call.1
$region0: #{tpu_custom_call.1}
  #allocation0 [shape = 'u32[]', space=smem, size = 0x4, offset = 0x4, fixed_abs, tag = 'smem constant byte address 0x4 - core index']
  #allocation1 [shape = 'u32[144,128]{1,0:T(1,128)}', space=vmem, size = 0x12000, scoped, tag = 'internal scratch']
  %s0 = inlined_call_operand.hbm [shape: f32[8,32], index: 0, kind: input, shape index: {}]
  %s1 = inlined_call_operand.hbm [shape: f32[8,32], index: 1, kind: input, shape index: {}]
  %s2 = inlined_call_operand.hbm [shape: f32[8,32], index: 2, kind: input, shape index: {}]
  %s3 = inlined_call_operand.hbm [shape: f32[32,32], index: 3, kind: input, shape index: {}]
  %s4 = inlined_call_operand.hbm [shape: f32[32,32], index: 4, kind: input, shape index: {}]
  %s5 = inlined_call_operand.vmem [shape: f32[6,32], index: 5, kind: input, shape index: {}]
  %s6 = inlined_call_operand.hbm [shape: f32[8,128], index: 6, kind: output, shape index: {}]
  %s7 = sld [smem:[#allocation0]]
  $region54: #{tpu_custom_call.1} parent=0
    _
  %s9 = ssub.s32 1, %s7
  %s10 = scalar_select 0, %s9, %s7
  $region1: #{tpu_custom_call.1} parent=0
    #allocation2 [shape = 'u8[4096]{0}', space=vmem, size = 0x1000, scoped, tag = 'input window, operand 0, single buffered']
    #allocation3 [shape = 's32[1]{0}', space=sflag, size = 0x4, scoped, tag = 'scoped memory for tpu_custom_call.1']
    #allocation4 [shape = 's32[1]{0}', space=sflag, size = 0x4, scoped, tag = 'scoped memory for tpu_custom_call.1']
    #allocation5 [shape = 'u8[4096]{0}', space=vmem, size = 0x1000, scoped, tag = 'input window, operand 1, single buffered']
    #allocation6 [shape = 's32[1]{0}', space=sflag, size = 0x4, scoped, tag = 'scoped memory for tpu_custom_call.1']
    #allocation7 [shape = 'u8[4096]{0}', space=vmem, size = 0x1000, scoped, tag = 'input window, operand 2, single buffered']
    #allocation8 [shape = 'u8[16384]{0}', space=vmem, size = 0x4000, scoped, tag = 'input window, operand 3, single buffered']
    #allocation9 [shape = 's32[1]{0}', space=sflag, size = 0x4, scoped, tag = 'scoped memory for tpu_custom_call.1']
    #allocation10 [shape = 'u8[16384]{0}', space=vmem, size = 0x4000, scoped, tag = 'input window, operand 4, single buffered']
    #allocation11 [shape = 'u8[4096]{0}', space=vmem, size = 0x1000, scoped, tag = 'output window, operand 0, single buffered']
    %11 = vsyncpa [#allocation3], 0
    %12 = vsyncpa [#allocation6], 0
    %13 = vsyncpa [#allocation9], 0
    %14 = vsyncpa [#allocation4], 0
    // Predicated region
    $region2: #{tpu_custom_call.1} parent=1 // pred_check
      _
    $region3: #{tpu_custom_call.1} parent=1 // pred_check_branch
      %16 = sbr.rel (0) target = $region5
    $region4: #{tpu_custom_call.1} parent=1 // pred_region
      %s18 = ssub.s32 128, 128
      %19 = vsyncadd [#allocation3], %s18
      %s21 = sshll.u32 [#allocation2], 4
      %s22 = int_to_ptr.vmem [resolvable:$true] %s21
      %24 = dma.hbm_to_vmem [thread:$0]  %s0, 128, %s22, [#allocation3]
    $region5: #{tpu_custom_call.1} parent=1 // pred_fallthru
      _
    // Predicated region
    $region6: #{tpu_custom_call.1} parent=1 // pred_check
      _
    $region7: #{tpu_custom_call.1} parent=1 // pred_check_branch
      %26 = sbr.rel (0) target = $region9
    $region8: #{tpu_custom_call.1} parent=1 // pred_region
      %s28 = ssub.s32 128, 128
      %29 = vsyncadd [#allocation6], %s28
      %s31 = sshll.u32 [#allocation5], 4
      %s32 = int_to_ptr.vmem [resolvable:$true] %s31
      %34 = dma.hbm_to_vmem [thread:$0]  %s1, 128, %s32, [#allocation6]
    $region9: #{tpu_custom_call.1} parent=1 // pred_fallthru
      _
    // Predicated region
    $region10: #{tpu_custom_call.1} parent=1 // pred_check
      _
    $region11: #{tpu_custom_call.1} parent=1 // pred_check_branch
      %36 = sbr.rel (0) target = $region13
    $region12: #{tpu_custom_call.1} parent=1 // pred_region
      %s38 = ssub.s32 128, 128
      %39 = vsyncadd [#allocation6], %s38
      %s41 = sshll.u32 [#allocation7], 4
      %s42 = int_to_ptr.vmem [resolvable:$true] %s41
      %44 = dma.hbm_to_vmem [thread:$0]  %s2, 128, %s42, [#allocation6]
    $region13: #{tpu_custom_call.1} parent=1 // pred_fallthru
      _
    // Predicated region
    $region14: #{tpu_custom_call.1} parent=1 // pred_check
      _
    $region15: #{tpu_custom_call.1} parent=1 // pred_check_branch
      %46 = sbr.rel (0) target = $region17
    $region16: #{tpu_custom_call.1} parent=1 // pred_region
      %s48 = ssub.s32 512, 512
      %49 = vsyncadd [#allocation9], %s48
      %s50 = sshll.u32 [#allocation8], 4
      %s51 = int_to_ptr.vmem [resolvable:$true] %s50
      %56 = dma.hbm_to_vmem [thread:$0]  %s3, 512, %s51, [#allocation9], 128, 128, 8
    $region17: #{tpu_custom_call.1} parent=1 // pred_fallthru
      _
    // Predicated region
    $region18: #{tpu_custom_call.1} parent=1 // pred_check
      _
    $region19: #{tpu_custom_call.1} parent=1 // pred_check_branch
      %58 = sbr.rel (0) target = $region21
    $region20: #{tpu_custom_call.1} parent=1 // pred_region
      %s60 = ssub.s32 512, 512
      %61 = vsyncadd [#allocation9], %s60
      %s62 = sshll.u32 [#allocation10], 4
      %s63 = int_to_ptr.vmem [resolvable:$true] %s62
      %68 = dma.hbm_to_vmem [thread:$0]  %s4, 512, %s63, [#allocation9], 128, 128, 8
    $region21: #{tpu_custom_call.1} parent=1 // pred_fallthru
      _
    // Predicated region
    $region22: #{tpu_custom_call.1} parent=1 // pred_check
      _
    $region23: #{tpu_custom_call.1} parent=1 // pred_check_branch
      %70 = sbr.rel (0) target = $region25
    $region24: #{tpu_custom_call.1} parent=1 // pred_region
      _
    $region25: #{tpu_custom_call.1} parent=1 // pred_fallthru
      _
    // Predicated region
    $region26: #{tpu_custom_call.1} parent=1 // pred_check
      _
    $region27: #{tpu_custom_call.1} parent=1 // pred_check_branch
      %72 = sbr.rel (0) target = $region29
    $region28: #{tpu_custom_call.1} parent=1 // pred_region
      %73 = dma.done [#allocation3], 128
    $region29: #{tpu_custom_call.1} parent=1 // pred_fallthru
      _
    // Predicated region
    $region30: #{tpu_custom_call.1} parent=1 // pred_check
      _
    $region31: #{tpu_custom_call.1} parent=1 // pred_check_branch
      %75 = sbr.rel (0) target = $region33
    $region32: #{tpu_custom_call.1} parent=1 // pred_region
      %76 = dma.done [#allocation6], 128
    $region33: #{tpu_custom_call.1} parent=1 // pred_fallthru
      _
    // Predicated region
    $region34: #{tpu_custom_call.1} parent=1 // pred_check
      _
    $region35: #{tpu_custom_call.1} parent=1 // pred_check_branch
      %78 = sbr.rel (0) target = $region37
    $region36: #{tpu_custom_call.1} parent=1 // pred_region
      %79 = dma.done [#allocation6], 128
    $region37: #{tpu_custom_call.1} parent=1 // pred_fallthru
      _
    // Predicated region
    $region38: #{tpu_custom_call.1} parent=1 // pred_check
      _
    $region39: #{tpu_custom_call.1} parent=1 // pred_check_branch
      %81 = sbr.rel (0) target = $region41
    $region40: #{tpu_custom_call.1} parent=1 // pred_region
      %82 = dma.done [#allocation9], 512
    $region41: #{tpu_custom_call.1} parent=1 // pred_fallthru
      _
    // Predicated region
    $region42: #{tpu_custom_call.1} parent=1 // pred_check
      _
    $region43: #{tpu_custom_call.1} parent=1 // pred_check_branch
      %84 = sbr.rel (0) target = $region45
    $region44: #{tpu_custom_call.1} parent=1 // pred_region
      %85 = dma.done [#allocation9], 512
    $region45: #{tpu_custom_call.1} parent=1 // pred_fallthru
      _
    %v86 = vld [vmem:[#allocation2] sm:$0xff]
    %v87 = vld [vmem:[#allocation5] sm:$0xff]
    %v88 = vadd.f32 %v86, %v87
    %v89 = vld [vmem:[#allocation7] sm:$0xff]
    %v90 = vadd.f32 %v88, %v89
    %v91 = vld [vmem:[#allocation8] sm:$0xff]
    %v92 = vld [vmem:[#allocation8 + $0x8] sm:$0xff]
    %v93 = vld [vmem:[#allocation8 + $0x10] sm:$0xff]
    %v94 = vld [vmem:[#allocation8 + $0x18] sm:$0xff]
    %v95 = vld [vmem:[#allocation10] sm:$0xff]
    %v96 = vld [vmem:[#allocation10 + $0x8] sm:$0xff]
    %v97 = vld [vmem:[#allocation10 + $0x10] sm:$0xff]
    %v98 = vld [vmem:[#allocation10 + $0x18] sm:$0xff]
    %v99 = vld [vmem:[%s5] sm:$0x3f]
    %v100 = vlaneseq
    %v101 = vshrl.u32 %v100, 7
    %v102 = vsub.s32 0, %v101
    %v103 = vrot.slane %v99, %v102
    %vm104 = vcmask 261120
    %v106 = vsel %vm104, %v90, 0
    %108 = vmatprep.subr.mxu0 0.0
    %109 = vmatpush1.msra.mxu0 %v91
    %110 = vmatprep.subr.mxu0 0.0
    %111 = vmatpush1.msra.mxu0 %v92
    %112 = vmatprep.subr.mxu0 0.0
    %113 = vmatpush1.msra.mxu0 %v93
    %114 = vmatprep.subr.mxu0 0.0
    %115 = vmatpush1.msra.mxu0 %v94
    %116 = vmatprep.subr.mxu0 0.0
    %117 = vmatpush1.msra.mxu0 0.0
    %118 = vmatprep.subr.mxu0 0.0
    %119 = vmatpush1.msra.mxu0 0.0
    %120 = vmatprep.subr.mxu0 0.0
    %121 = vmatpush1.msra.mxu0 0.0
    %122 = vmatprep.subr.mxu0 0.0
    %123 = vmatpush1.msra.mxu0 0.0
    %124 = vmatprep.subr.mxu0 0.0
    %125 = vmatpush1.msra.mxu0 0.0
    %126 = vmatprep.subr.mxu0 0.0
    %127 = vmatpush1.msra.mxu0 0.0
    %128 = vmatprep.subr.mxu0 0.0
    %129 = vmatpush1.msra.mxu0 0.0
    %130 = vmatprep.subr.mxu0 0.0
    %131 = vmatpush1.msra.mxu0 0.0
    %132 = vmatprep.subr.mxu0 0.0
    %133 = vmatpush1.msra.mxu0 0.0
    %134 = vmatprep.subr.mxu0 0.0
    %135 = vmatpush1.msra.mxu0 0.0
    %136 = vmatprep.subr.mxu0 0.0
    %137 = vmatpush1.msra.mxu0 0.0
    %138 = vmatprep.subr.mxu0 0.0
    %139 = vmatpush1.msra.mxu0 0.0
    %140 = vmatprep.subr.mxu0 0.0
    %141 = vmatpush1.msra.mxu0 0.0
    %142 = vmatprep.subr.mxu0 0.0
    %143 = vmatpush1.msra.mxu0 0.0
    %144 = vmatprep.subr.mxu0 0.0
    %145 = vmatpush1.msra.mxu0 0.0
    %146 = vmatprep.subr.mxu0 0.0
    %147 = vmatpush1.msra.mxu0 0.0
    %148 = vmatprep.subr.mxu0 0.0
    %149 = vmatpush1.msra.mxu0 0.0
    %150 = vmatprep.subr.mxu0 0.0
    %151 = vmatpush1.msra.mxu0 0.0
    %152 = vmatprep.subr.mxu0 0.0
    %153 = vmatpush1.msra.mxu0 0.0
    %154 = vmatprep.subr.mxu0 0.0
    %155 = vmatpush1.msra.mxu0 0.0
    %156 = vmatprep.subr.mxu0 0.0
    %157 = vmatpush1.msra.mxu0 0.0
    %158 = vmatprep.subr.mxu0 0.0
    %159 = vmatpush1.msra.mxu0 0.0
    %160 = vmatprep.subr.mxu0 0.0
    %161 = vmatpush1.msra.mxu0 0.0
    %162 = vmatprep.subr.mxu0 0.0
    %163 = vmatpush1.msra.mxu0 0.0
    %164 = vmatprep.subr.mxu0 0.0
    %165 = vmatpush1.msra.mxu0 0.0
    %166 = vmatprep.subr.mxu0 0.0
    %167 = vmatpush1.msra.mxu0 0.0
    %168 = vmatprep.subr.mxu0 0.0
    %169 = vmatpush1.msra.mxu0 0.0
    %170 = vmatprep.subr.mxu0 0.0
    %171 = vmatpush1.msra.mxu0 0.0
    %172 = vmatprep.mubr.f32.mxu0 0.0
    %173 = vmatmul.mubr.f32.gmra.mrb[0].mxu0 %v106
    %v174 = vpop.f32.mrb[0].mxu0
    %v175 = vadd.f32 %v103, %v174
    %v176 = vpop.f32.mrb[0].mxu0
    %177 = vdwg.mxu0
    %v178 = vlaneseq
    %v179 = vshrl.u32 %v178, 7
    %v180 = vsub.s32 1, %v179
    %v181 = vrot.slane %v99, %v180
    %182 = vmatprep.subr.mxu0 0.0
    %183 = vmatpush1.msra.mxu0 %v95
    %184 = vmatprep.subr.mxu0 0.0
    %185 = vmatpush1.msra.mxu0 %v96
    %186 = vmatprep.subr.mxu0 0.0
    %187 = vmatpush1.msra.mxu0 %v97
    %188 = vmatprep.subr.mxu0 0.0
    %189 = vmatpush1.msra.mxu0 %v98
    %190 = vmatprep.subr.mxu0 0.0
    %191 = vmatpush1.msra.mxu0 0.0
    %192 = vmatprep.subr.mxu0 0.0
    %193 = vmatpush1.msra.mxu0 0.0
    %194 = vmatprep.subr.mxu0 0.0
    %195 = vmatpush1.msra.mxu0 0.0
    %196 = vmatprep.subr.mxu0 0.0
    %197 = vmatpush1.msra.mxu0 0.0
    %198 = vmatprep.subr.mxu0 0.0
    %199 = vmatpush1.msra.mxu0 0.0
    %200 = vmatprep.subr.mxu0 0.0
    %201 = vmatpush1.msra.mxu0 0.0
    %202 = vmatprep.subr.mxu0 0.0
    %203 = vmatpush1.msra.mxu0 0.0
    %204 = vmatprep.subr.mxu0 0.0
    %205 = vmatpush1.msra.mxu0 0.0
    %206 = vmatprep.subr.mxu0 0.0
    %207 = vmatpush1.msra.mxu0 0.0
    %208 = vmatprep.subr.mxu0 0.0
    %209 = vmatpush1.msra.mxu0 0.0
    %210 = vmatprep.subr.mxu0 0.0
    %211 = vmatpush1.msra.mxu0 0.0
    %212 = vmatprep.subr.mxu0 0.0
    %213 = vmatpush1.msra.mxu0 0.0
    %214 = vmatprep.subr.mxu0 0.0
    %215 = vmatpush1.msra.mxu0 0.0
    %216 = vmatprep.subr.mxu0 0.0
    %217 = vmatpush1.msra.mxu0 0.0
    %218 = vmatprep.subr.mxu0 0.0
    %219 = vmatpush1.msra.mxu0 0.0
    %220 = vmatprep.subr.mxu0 0.0
    %221 = vmatpush1.msra.mxu0 0.0
    %222 = vmatprep.subr.mxu0 0.0
    %223 = vmatpush1.msra.mxu0 0.0
    %224 = vmatprep.subr.mxu0 0.0
    %225 = vmatpush1.msra.mxu0 0.0
    %226 = vmatprep.subr.mxu0 0.0
    %227 = vmatpush1.msra.mxu0 0.0
    %228 = vmatprep.subr.mxu0 0.0
    %229 = vmatpush1.msra.mxu0 0.0
    %230 = vmatprep.subr.mxu0 0.0
    %231 = vmatpush1.msra.mxu0 0.0
    %232 = vmatprep.subr.mxu0 0.0
    %233 = vmatpush1.msra.mxu0 0.0
    %234 = vmatprep.subr.mxu0 0.0
    %235 = vmatpush1.msra.mxu0 0.0
    %236 = vmatprep.subr.mxu0 0.0
    %237 = vmatpush1.msra.mxu0 0.0
    %238 = vmatprep.subr.mxu0 0.0
    %239 = vmatpush1.msra.mxu0 0.0
    %240 = vmatprep.subr.mxu0 0.0
    %241 = vmatpush1.msra.mxu0 0.0
    %242 = vmatprep.subr.mxu0 0.0
    %243 = vmatpush1.msra.mxu0 0.0
    %244 = vmatprep.subr.mxu0 0.0
    %245 = vmatpush1.msra.mxu0 0.0
    %246 = vmatprep.mubr.f32.mxu0 0.0
    %247 = vmatmul.mubr.f32.gmra.mrb[0].mxu0 %v106
    %v248 = vpop.f32.mrb[0].mxu0
    %v249 = vadd.f32 %v181, %v248
    %v250 = vpop.f32.mrb[0].mxu0
    %251 = vdwg.mxu0
    %v252 = vsel %vm104, %v175, 0.0
    %253 = vadd.xlane.f32.xlu0 %v252
    %v254 = vpop.xlane.xlu0 %253
    %v255 = vsel %vm104, %v249, 0.0
    %256 = vadd.xlane.f32.xlu0 %v255
    %v257 = vpop.xlane.xlu0 %256
    %v258 = vadd.f32 %v254, %v257
    %v259 = vmul.f32 %v258, 0.015625
    %v260 = vsub.f32 %v175, %v259
    %v261 = vsub.f32 %v249, %v259
    %v262 = vmul.f32 %v260, %v260
    %v263 = vsel %vm104, %v262, 0.0
    %264 = vadd.xlane.f32.xlu0 %v263
    %v265 = vpop.xlane.xlu0 %264
    %v266 = vmul.f32 %v261, %v261
    %v267 = vsel %vm104, %v266, 0.0
    %268 = vadd.xlane.f32.xlu0 %v267
    %v269 = vpop.xlane.xlu0 %268
    %v270 = vadd.f32 %v265, %v269
    %v271 = vmul.f32 %v270, 0.015625
    %v272 = vadd.f32 %v271, 1e-05
    %v273 = vrsqrt.pop %v272
    %v274 = vmul.f32 %v260, %v273
    %v275 = vlaneseq
    %v276 = vshrl.u32 %v275, 7
    %v277 = vsub.s32 2, %v276
    %v278 = vrot.slane %v99, %v277
    %v279 = vmul.f32 %v274, %v278
    %v280 = vlaneseq
    %v281 = vshrl.u32 %v280, 7
    %v282 = vsub.s32 4, %v281
    %v283 = vrot.slane %v99, %v282
    %v284 = vadd.f32 %v279, %v283
    %v285 = vmax.f32 %v284, 0.0
    %v286 = vmul.f32 %v261, %v273
    %v287 = vlaneseq
    %v288 = vshrl.u32 %v287, 7
    %v289 = vsub.s32 3, %v288
    %v290 = vrot.slane %v99, %v289
    %v291 = vmul.f32 %v286, %v290
    %v292 = vlaneseq
    %v293 = vshrl.u32 %v292, 7
    %v294 = vsub.s32 5, %v293
    %v295 = vrot.slane %v99, %v294
    %v296 = vadd.f32 %v291, %v295
    %v297 = vmax.f32 %v296, 0.0
    %v298 = vsub.f32 %v285, %v297
    %v299 = vxor.u32 %v298, 2147483648
    %v300 = vmul.f32 %v299, 1.442695
    %v301 = vpow.pop %v300
    %v302 = vadd.f32 %v301, 1.0
    %v303 = vrcp.pop %v302
    %v304 = vmul.f32 1.0, %v303
    %v305 = vsub.f32 1.0, %v304
    %v306 = vmul.f32 %v86, %v304
    %v307 = vsub.f32 %v86, %v306
    %309 = vrot.lane.b32.xlu0 %v307, 32
    %v310 = vpop.permute.xlu0 %309
    %313 = vrot.lane.b32.xlu0 %v304, 64
    %v314 = vpop.permute.xlu0 %313
    %317 = vrot.lane.b32.xlu0 %v305, 96
    %v318 = vpop.permute.xlu0 %317
    %v320 = vsel %vm104, %v306, %v310
    %vm321 = vcmask 523264
    %v322 = vsel %vm321, %v320, %v314
    %vm323 = vcmask 785408
    %v324 = vsel %vm323, %v322, %v318
    %325 = vst [vmem:[#allocation11] sm:$0xff] %v324
    // Predicated region
    $region46: #{tpu_custom_call.1} parent=1 // pred_check
      _
    $region47: #{tpu_custom_call.1} parent=1 // pred_check_branch
      %327 = sbr.rel (0) target = $region49
    $region48: #{tpu_custom_call.1} parent=1 // pred_region
      %s329 = ssub.s32 128, 128
      %330 = vsyncadd [#allocation4], %s329
      %s332 = sshll.u32 [#allocation11], 4
      %s333 = int_to_ptr.vmem [resolvable:$true] %s332
      %335 = dma.vmem_to_hbm [thread:$0]  %s333, 128, %s6, [#allocation4]
    $region49: #{tpu_custom_call.1} parent=1 // pred_fallthru
      _
    // Predicated region
    $region50: #{tpu_custom_call.1} parent=1 // pred_check
      _
    $region51: #{tpu_custom_call.1} parent=1 // pred_check_branch
      %337 = sbr.rel (0) target = $region53
    $region52: #{tpu_custom_call.1} parent=1 // pred_region
      %338 = dma.done [#allocation4], 128
    $region53: #{tpu_custom_call.1} parent=1 // pred_fallthru
      _
    %339 = vsyncpa [#allocation3], 1
    %340 = vsyncpa [#allocation6], 1
    %341 = vsyncpa [#allocation9], 1
    %342 = vsyncpa [#allocation4], 1

</llo_original>
